<compile_context>
chip_gen: v6e
topology: v6e:2x2x1
jax: 0.10.0
libtpu: 0.0.40
codegen_flags: <defaults>
</compile_context>

<pallas_src>
import jax
import jax.numpy as jnp
import numpy as np
from jax.experimental import pallas as pl
from jax.experimental.pallas import tpu as pltpu


def _round_up(x: int, m: int) -> int:
    return ((x + m - 1) // m) * m


def _make_ncl_kernel(total_layers: int, n_layers: int, block_rows: int,
                     adj_pinned: bool, compute_dtype):
    """Kernel body with static layer counts / tiling baked in."""
    inv_count = 1.0 / float(n_layers + 1)

    def kernel(adj_ref, ego_ref, emb_ref, mean_ref, e_scratch, acc_scratch):
        # adj_ref : pinned -> (N_pad, N_pad) | streamed -> (TM, N_pad), bf16/f32
        # ego_ref : (N_pad, D_pad) f32, resident (constant index_map)
        # emb_ref : (TM, D_pad) f32 block of layer k+1 (leading layer dim squeezed)
        # mean_ref: (TM, D_pad) f32 block of the LightGCN mean
        # e_scratch  : (2, N_pad, D_pad) compute_dtype, double-buffered E_k
        # acc_scratch: (N_pad, D_pad) f32, running sum of E_0..E_n_layers
        k = pl.program_id(0)                       # layer index (outer, sequential)
        r = pl.program_id(1)                       # row-tile index (inner)
        row0 = pl.multiple_of(r * block_rows, block_rows)
        rows = pl.ds(row0, block_rows)

        # One-time: stage E_0 (= ego) into the scratch slot that layer 0 reads.
        @pl.when((k == 0) & (r == 0))
        def _stage_ego():
            e_scratch[1] = ego_ref[...].astype(compute_dtype)

        write_slot = k % 2
        read_slot = 1 - write_slot

        prev = e_scratch[read_slot]                # (N_pad, D_pad), full E_k
        if adj_pinned:
            a_tile = adj_ref[rows, :]              # (TM, N_pad) slice of pinned A
        else:
            a_tile = adj_ref[...]                  # streamed (TM, N_pad) tile

        # bf16 x bf16 (or f32 x f32) on the MXU, f32 accumulation.
        new_tile = jnp.dot(a_tile, prev, preferred_element_type=jnp.float32)
        new_c = new_tile.astype(compute_dtype)

        # E_{k+1} rows -> double-buffered scratch (static slot via pl.when).
        @pl.when(write_slot == 0)
        def _store0():
            e_scratch[0, rows, :] = new_c

        @pl.when(write_slot == 1)
        def _store1():
            e_scratch[1, rows, :] = new_c

        # Per-layer embedding tile (lane-dense, unmasked store) -> HBM.
        emb_ref[...] = new_tile

        # LightGCN mean accumulator: E_0 + E_1 + ... + E_{n_layers}.
        @pl.when(k == 0)
        def _init_acc():
            acc_scratch[rows, :] = ego_ref[rows, :]

        @pl.when(k < n_layers)
        def _accumulate():
            acc_scratch[rows, :] = acc_scratch[rows, :] + new_tile

        @pl.when(k == total_layers - 1)
        def _finalize():
            mean_ref[...] = acc_scratch[rows, :] * inv_count

    return kernel


def ncl_forward(norm_adj, ego_embeddings, *, n_layers: int, hyper_layers: int,
                n_drugs: int, block_rows: int = 128,
                adj_dtype=jnp.bfloat16, vmem_budget_bytes: int = 40 * 2**20):
    """Pallas implementation of NCL.forward(norm_adj).

    Returns (drug_all_embeddings, disease_all_embeddings, embeddings_list)
    matching the PyTorch module semantics (embeddings_list[0] == ego).
    """
    N, D = ego_embeddings.shape
    assert norm_adj.shape == (N, N)
    total_layers = max(n_layers, hyper_layers * 2)
    assert total_layers >= 1, "need at least one propagation layer"
    TM = block_rows
    assert TM % 128 == 0, "block_rows must be a multiple of 128"

    N_pad = _round_up(N, TM)
    D_pad = _round_up(max(D, 128), 128)          # lane-dense outputs / MXU width
    R = N_pad // TM

    f32b = 4
    cbytes = jnp.dtype(adj_dtype).itemsize

    # Zero-padded operands (padding preserves the top-left block exactly).
    adj_p = jnp.zeros((N_pad, N_pad), adj_dtype).at[:N, :N].set(
        norm_adj.astype(adj_dtype))
    ego_p = jnp.zeros((N_pad, D_pad), jnp.float32).at[:N, :D].set(
        ego_embeddings.astype(jnp.float32))

    # ---- VMEM footprint / adjacency residency decision (sized for v7x 64 MiB).
    scratch_bytes = 2 * N_pad * D_pad * cbytes + N_pad * D_pad * f32b
    ego_bytes = 2 * N_pad * D_pad * f32b                      # double-buffered input
    out_bytes = 2 * 2 * TM * D_pad * f32b                     # emb + mean blocks
    pinned_adj_bytes = N_pad * N_pad * cbytes
    streamed_adj_bytes = 3 * TM * N_pad * cbytes              # Buffered(3)
    base = scratch_bytes + ego_bytes + out_bytes
    pin_adj = (base + pinned_adj_bytes) <= vmem_budget_bytes
    footprint = base + (pinned_adj_bytes if pin_adj else streamed_adj_bytes)
    if footprint > vmem_budget_bytes:
        raise ValueError(
            f"NCL working set ({footprint / 2**20:.1f} MiB) exceeds the VMEM "
            "budget; reduce block_rows or shard the graph.")
    vmem_limit = int(min(max(2 * footprint, 32 * 2**20), 64 * 2**20))

    if pin_adj:
        # A is DMA'd once (constant block index) and reused for every layer.
        adj_spec = pl.BlockSpec((N_pad, N_pad), lambda k, r: (0, 0))
    else:
        _adj_idx = lambda k, r: (r, 0)
        try:
            adj_spec = pl.BlockSpec((TM, N_pad), _adj_idx,
                                    pipeline_mode=pl.Buffered(3))
        except TypeError:  # older/newer API without pipeline_mode
            adj_spec = pl.BlockSpec((TM, N_pad), _adj_idx)

    kernel = _make_ncl_kernel(total_layers, n_layers, TM, pin_adj, adj_dtype)

    grid_spec = pltpu.PrefetchScalarGridSpec(
        num_scalar_prefetch=0,
        grid=(total_layers, R),                   # layer outer, row tiles inner
        in_specs=[
            adj_spec,
            pl.BlockSpec((N_pad, D_pad), lambda k, r: (0, 0)),    # ego, resident
        ],
        out_specs=(
            # layer (k+1) result, one (TM, 128) block per grid step
            pl.BlockSpec((None, TM, D_pad), lambda k, r: (k, r, 0)),
            # LightGCN mean, written only on the final layer
            pl.BlockSpec((TM, D_pad), lambda k, r: (r, 0)),
        ),
        scratch_shapes=[
            pltpu.VMEM((2, N_pad, D_pad), adj_dtype),     # double-buffered E_k
            pltpu.VMEM((N_pad, D_pad), jnp.float32),      # mean accumulator
        ],
    )

    emb_layers, mean_p = pl.pallas_call(
        kernel,
        grid_spec=grid_spec,
        out_shape=(
            jax.ShapeDtypeStruct((total_layers, N_pad, D_pad), jnp.float32),
            jax.ShapeDtypeStruct((N_pad, D_pad), jnp.float32),
        ),
        compiler_params=pltpu.CompilerParams(
            # Both axes sequential: row tiles share the E_k scratch across layers.
            dimension_semantics=("arbitrary", "arbitrary"),
            vmem_limit_bytes=vmem_limit),
    )(adj_p, ego_p)

    mean = mean_p[:N, :D]
    drug_all = mean[:n_drugs]
    disease_all = mean[n_drugs:]
    embeddings_list = [ego_embeddings.astype(jnp.float32)] + [
        emb_layers[k, :N, :D] for k in range(total_layers)]
    return drug_all, disease_all, embeddings_list


def build_norm_adj(drug_disease_matrix: np.ndarray) -> np.ndarray:
    """Dense equivalent of NCL.get_norm_adj_mat (D^-1/2 A D^-1/2)."""
    n_drugs, n_diseases = drug_disease_matrix.shape
    N = n_drugs + n_diseases
    A = np.zeros((N, N), dtype=np.float32)
    A[:n_drugs, n_drugs:] = drug_disease_matrix
    A[n_drugs:, :n_drugs] = drug_disease_matrix.T
    deg = (A > 0).sum(axis=1).astype(np.float64) + 1e-7
    d_inv_sqrt = np.power(deg, -0.5)
    L = (d_inv_sqrt[:, None] * A) * d_inv_sqrt[None, :]
    return L.astype(np.float32)


def xavier_uniform(key, shape):
    fan_in, fan_out = shape[0], shape[1]
    bound = float(np.sqrt(6.0 / (fan_in + fan_out)))
    return jax.random.uniform(key, shape, jnp.float32, -bound, bound)


if __name__ == "__main__":
    # ---- module hyper-parameters (small, but large enough to exercise tiling:
    #      N = 160 nodes -> padded to 256 = two 128-row tiles; 4 layers). ----
    n_drugs, n_diseases = 60, 100
    embedding_dim = 16
    n_layers = 3
    hyper_layers = 2                  # total propagation steps = max(3, 4) = 4
    total_layers = max(n_layers, hyper_layers * 2)

    key = jax.random.PRNGKey(0)
    k_mat, k_drug, k_dis = jax.random.split(key, 3)

    drug_disease_matrix = np.asarray(
        jax.random.bernoulli(k_mat, 0.25, (n_drugs, n_diseases)),
        dtype=np.float32)

    drug_embedding = xavier_uniform(k_drug, (n_drugs, embedding_dim))
    disease_embedding = xavier_uniform(k_dis, (n_diseases, embedding_dim))
    ego_embeddings = jnp.concatenate([drug_embedding, disease_embedding], axis=0)
    norm_adj = jnp.asarray(build_norm_adj(drug_disease_matrix))

    drug_all, disease_all, emb_list = ncl_forward(
        norm_adj, ego_embeddings,
        n_layers=n_layers, hyper_layers=hyper_layers, n_drugs=n_drugs)

    jax.block_until_ready(drug_all)
    jax.block_until_ready(disease_all)
    jax.block_until_ready(emb_list[-1])

    # ---- reference matching the kernel's bf16-adjacency compute precision ----
    hi = jax.lax.Precision.HIGHEST
    adj_eff = norm_adj.astype(jnp.bfloat16).astype(jnp.float32)
    e = ego_embeddings.astype(jnp.float32)
    ref_list = [e]
    for _ in range(total_layers):
        e_in = e.astype(jnp.bfloat16).astype(jnp.float32)
        e = jnp.matmul(adj_eff, e_in, precision=hi)
        ref_list.append(e)
    ref_mean = jnp.mean(jnp.stack(ref_list[:n_layers + 1], axis=0), axis=0)

    np.testing.assert_allclose(np.asarray(drug_all),
                               np.asarray(ref_mean[:n_drugs]),
                               rtol=2e-2, atol=5e-4)
    np.testing.assert_allclose(np.asarray(disease_all),
                               np.asarray(ref_mean[n_drugs:]),
                               rtol=2e-2, atol=5e-4)
    for kk in range(total_layers + 1):
        np.testing.assert_allclose(np.asarray(emb_list[kk]),
                                   np.asarray(ref_list[kk]),
                                   rtol=2e-2, atol=5e-4)

    print("KERNEL_OK")
</pallas_src>

<mosaic_0001>
module attributes {stable_mosaic.version = 11 : i64} {
  func.func @kernel(%arg0: i32, %arg1: i32, %arg2: memref<256x256xbf16, #tpu.memory_space<vmem>>, %arg3: memref<256x128xf32, #tpu.memory_space<vmem>>, %arg4: memref<1x128x128xf32, #tpu.memory_space<vmem>>, %arg5: memref<128x128xf32, #tpu.memory_space<vmem>>, %arg6: memref<2x256x128xbf16, #tpu.memory_space<vmem>>, %arg7: memref<256x128xf32, #tpu.memory_space<vmem>>) attributes {dimension_semantics = [#tpu.dimension_semantics<arbitrary>, #tpu.dimension_semantics<arbitrary>], iteration_bounds = array<i64: 4, 2>, scalar_prefetch = 0 : i64, scratch_operands = 2 : i64, tpu.core_type = #tpu.core_type<tc>, window_params = [{pipeline_mode = #tpu.pipeline_mode<synchronous>, transform_indices = @transform_0, window_bounds = array<i64: 256, 256>}, {pipeline_mode = #tpu.pipeline_mode<synchronous>, transform_indices = @transform_1, window_bounds = array<i64: 256, 128>}, {transform_indices = @transform_2, window_bounds = array<i64: 1, 128, 128>}, {transform_indices = @transform_3, window_bounds = array<i64: 128, 128>}]} {
    %c128_i32 = arith.constant 128 : i32
    %0 = arith.muli %arg1, %c128_i32 : i32
    %1 = tpu.assume_multiple %0, 128 : i32
    %c0_i32 = arith.constant 0 : i32
    %2 = arith.cmpi eq, %arg0, %c0_i32 : i32
    %c0_i32_0 = arith.constant 0 : i32
    %3 = arith.cmpi eq, %arg1, %c0_i32_0 : i32
    %4 = arith.andi %2, %3 : i1
    %5 = arith.extui %4 : i1 to i32
    %c0_i32_1 = arith.constant 0 : i32
    %6 = arith.cmpi ne, %5, %c0_i32_1 : i32
    scf.if %6 {
      %c0_21 = arith.constant 0 : index
      %c0_22 = arith.constant 0 : index
      %43 = vector.load %arg3[%c0_21, %c0_22] : memref<256x128xf32, #tpu.memory_space<vmem>>, vector<256x128xf32>
      %44 = arith.truncf %43 : vector<256x128xf32> to vector<256x128xbf16>
      %c1 = arith.constant 1 : index
      %c0_23 = arith.constant 0 : index
      %c0_24 = arith.constant 0 : index
      %45 = vector.load %arg6[%c1, %c0_23, %c0_24] : memref<2x256x128xbf16, #tpu.memory_space<vmem>>, vector<1x256x128xbf16>
      %46 = vector.shape_cast %45 : vector<1x256x128xbf16> to vector<256x128xbf16>
      %47 = vector.shape_cast %44 : vector<256x128xbf16> to vector<1x256x128xbf16>
      tpu.vector_store %arg6[%c1, %c0_23, %c0_24], %47 {strides = array<i32>} : memref<2x256x128xbf16, #tpu.memory_space<vmem>>, vector<1x256x128xbf16>,
    } else {
    }
    %c2_i32 = arith.constant 2 : i32
    %c0_i32_2 = arith.constant 0 : i32
    %7 = arith.cmpi eq, %c2_i32, %c0_i32_2 : i32
    %c1_i32 = arith.constant 1 : i32
    %8 = arith.select %7, %c1_i32, %c2_i32 : i32
    %9 = arith.remsi %arg0, %8 : i32
    %c0_i32_3 = arith.constant 0 : i32
    %10 = arith.cmpi ne, %9, %c0_i32_3 : i32
    %c0_i32_4 = arith.constant 0 : i32
    %11 = arith.cmpi slt, %9, %c0_i32_4 : i32
    %c0_i32_5 = arith.constant 0 : i32
    %12 = arith.cmpi slt, %8, %c0_i32_5 : i32
    %13 = arith.xori %11, %12 : i1
    %14 = arith.andi %13, %10 : i1
    %15 = arith.addi %9, %8 : i32
    %16 = arith.select %14, %15, %9 : i32
    %c1_i32_6 = arith.constant 1 : i32
    %17 = arith.subi %c1_i32_6, %16 : i32
    %18 = arith.index_cast %17 : i32 to index
    %c0 = arith.constant 0 : index
    %c0_7 = arith.constant 0 : index
    %19 = vector.load %arg6[%18, %c0, %c0_7] : memref<2x256x128xbf16, #tpu.memory_space<vmem>>, vector<1x256x128xbf16>
    %20 = vector.shape_cast %19 : vector<1x256x128xbf16> to vector<256x128xbf16>
    %21 = arith.index_cast %1 : i32 to index
    %c0_8 = arith.constant 0 : index
    %22 = vector.load %arg2[%21, %c0_8] : memref<256x256xbf16, #tpu.memory_space<vmem>>, vector<128x256xbf16>
    %cst = arith.constant dense<0.000000e+00> : vector<128x128xf32>
    %23 = tpu.matmul %22, %20, %cst {dimension_numbers = #tpu.dot_dimension_numbers<[1], [0], [0], [1], [0, 0, 1, 1], [], []>} : vector<128x256xbf16>, vector<256x128xbf16>, vector<128x128xf32> -> vector<128x128xf32>
    %24 = arith.truncf %23 : vector<128x128xf32> to vector<128x128xbf16>
    %c0_i32_9 = arith.constant 0 : i32
    %25 = arith.cmpi eq, %16, %c0_i32_9 : i32
    %26 = arith.extui %25 : i1 to i32
    %c0_i32_10 = arith.constant 0 : i32
    %27 = arith.cmpi ne, %26, %c0_i32_10 : i32
    scf.if %27 {
      %c0_21 = arith.constant 0 : index
      %43 = arith.index_cast %1 : i32 to index
      %c0_22 = arith.constant 0 : index
      %44 = vector.load %arg6[%c0_21, %43, %c0_22] : memref<2x256x128xbf16, #tpu.memory_space<vmem>>, vector<1x128x128xbf16>
      %45 = vector.shape_cast %44 : vector<1x128x128xbf16> to vector<128x128xbf16>
      %46 = vector.shape_cast %24 : vector<128x128xbf16> to vector<1x128x128xbf16>
      tpu.vector_store %arg6[%c0_21, %43, %c0_22], %46 {strides = array<i32>} : memref<2x256x128xbf16, #tpu.memory_space<vmem>>, vector<1x128x128xbf16>,
    } else {
    }
    %c1_i32_11 = arith.constant 1 : i32
    %28 = arith.cmpi eq, %16, %c1_i32_11 : i32
    %29 = arith.extui %28 : i1 to i32
    %c0_i32_12 = arith.constant 0 : i32
    %30 = arith.cmpi ne, %29, %c0_i32_12 : i32
    scf.if %30 {
      %c1 = arith.constant 1 : index
      %43 = arith.index_cast %1 : i32 to index
      %c0_21 = arith.constant 0 : index
      %44 = vector.load %arg6[%c1, %43, %c0_21] : memref<2x256x128xbf16, #tpu.memory_space<vmem>>, vector<1x128x128xbf16>
      %45 = vector.shape_cast %44 : vector<1x128x128xbf16> to vector<128x128xbf16>
      %46 = vector.shape_cast %24 : vector<128x128xbf16> to vector<1x128x128xbf16>
      tpu.vector_store %arg6[%c1, %43, %c0_21], %46 {strides = array<i32>} : memref<2x256x128xbf16, #tpu.memory_space<vmem>>, vector<1x128x128xbf16>,
    } else {
    }
    %c0_13 = arith.constant 0 : index
    %c0_14 = arith.constant 0 : index
    %c0_15 = arith.constant 0 : index
    %31 = vector.load %arg4[%c0_13, %c0_14, %c0_15] : memref<1x128x128xf32, #tpu.memory_space<vmem>>, vector<1x128x128xf32>
    %32 = vector.shape_cast %31 : vector<1x128x128xf32> to vector<128x128xf32>
    %33 = vector.shape_cast %23 : vector<128x128xf32> to vector<1x128x128xf32>
    tpu.vector_store %arg4[%c0_13, %c0_14, %c0_15], %33 {strides = array<i32>} : memref<1x128x128xf32, #tpu.memory_space<vmem>>, vector<1x128x128xf32>,
    %c0_i32_16 = arith.constant 0 : i32
    %34 = arith.cmpi eq, %arg0, %c0_i32_16 : i32
    %35 = arith.extui %34 : i1 to i32
    %c0_i32_17 = arith.constant 0 : i32
    %36 = arith.cmpi ne, %35, %c0_i32_17 : i32
    scf.if %36 {
      %43 = arith.index_cast %1 : i32 to index
      %c0_21 = arith.constant 0 : index
      %44 = vector.load %arg3[%43, %c0_21] : memref<256x128xf32, #tpu.memory_space<vmem>>, vector<128x128xf32>
      %45 = arith.index_cast %1 : i32 to index
      %c0_22 = arith.constant 0 : index
      %46 = vector.load %arg7[%45, %c0_22] : memref<256x128xf32, #tpu.memory_space<vmem>>, vector<128x128xf32>
      tpu.vector_store %arg7[%45, %c0_22], %44 {strides = array<i32>} : memref<256x128xf32, #tpu.memory_space<vmem>>, vector<128x128xf32>,
    } else {
    }
    %c3_i32 = arith.constant 3 : i32
    %37 = arith.cmpi slt, %arg0, %c3_i32 : i32
    %38 = arith.extui %37 : i1 to i32
    %c0_i32_18 = arith.constant 0 : i32
    %39 = arith.cmpi ne, %38, %c0_i32_18 : i32
    scf.if %39 {
      %43 = arith.index_cast %1 : i32 to index
      %c0_21 = arith.constant 0 : index
      %44 = vector.load %arg7[%43, %c0_21] : memref<256x128xf32, #tpu.memory_space<vmem>>, vector<128x128xf32>
      %45 = arith.addf %44, %23 : vector<128x128xf32>
      %46 = arith.index_cast %1 : i32 to index
      %c0_22 = arith.constant 0 : index
      %47 = vector.load %arg7[%46, %c0_22] : memref<256x128xf32, #tpu.memory_space<vmem>>, vector<128x128xf32>
      tpu.vector_store %arg7[%46, %c0_22], %45 {strides = array<i32>} : memref<256x128xf32, #tpu.memory_space<vmem>>, vector<128x128xf32>,
    } else {
    }
    %c3_i32_19 = arith.constant 3 : i32
    %40 = arith.cmpi eq, %arg0, %c3_i32_19 : i32
    %41 = arith.extui %40 : i1 to i32
    %c0_i32_20 = arith.constant 0 : i32
    %42 = arith.cmpi ne, %41, %c0_i32_20 : i32
    scf.if %42 {
      %43 = arith.index_cast %1 : i32 to index
      %c0_21 = arith.constant 0 : index
      %44 = vector.load %arg7[%43, %c0_21] : memref<256x128xf32, #tpu.memory_space<vmem>>, vector<128x128xf32>
      %cst_22 = arith.constant 2.500000e-01 : f32
      %45 = vector.broadcast %cst_22 : f32 to vector<128x128xf32>
      %46 = arith.mulf %44, %45 : vector<128x128xf32>
      %c0_23 = arith.constant 0 : index
      %c0_24 = arith.constant 0 : index
      %47 = vector.load %arg5[%c0_23, %c0_24] : memref<128x128xf32, #tpu.memory_space<vmem>>, vector<128x128xf32>
      tpu.vector_store %arg5[%c0_23, %c0_24], %46 {strides = array<i32>} : memref<128x128xf32, #tpu.memory_space<vmem>>, vector<128x128xf32>,
    } else {
    }
    return
  }
  func.func @transform_0(%arg0: i32, %arg1: i32) -> (i32, i32) {
    %c0_i32 = arith.constant 0 : i32
    %c0_i32_0 = arith.constant 0 : i32
    %c0_i32_1 = arith.constant 0 : i32
    return %c0_i32, %c0_i32_0 : i32, i32
  }
  func.func @transform_1(%arg0: i32, %arg1: i32) -> (i32, i32) {
    %c0_i32 = arith.constant 0 : i32
    %c0_i32_0 = arith.constant 0 : i32
    %c0_i32_1 = arith.constant 0 : i32
    return %c0_i32, %c0_i32_0 : i32, i32
  }
  func.func @transform_2(%arg0: i32, %arg1: i32) -> (i32, i32, i32) {
    %c0_i32 = arith.constant 0 : i32
    %c0_i32_0 = arith.constant 0 : i32
    return %arg0, %arg1, %c0_i32 : i32, i32, i32
  }
  func.func @transform_3(%arg0: i32, %arg1: i32) -> (i32, i32) {
    %c0_i32 = arith.constant 0 : i32
    %c0_i32_0 = arith.constant 0 : i32
    return %arg1, %c0_i32 : i32, i32
  }
}

</mosaic_0001>

<llo_original>
// kernel: tpu_custom_call.1
$region0: #{tpu_custom_call.1}
  #allocation0 [shape = 'u32[]', space=smem, size = 0x4, offset = 0x4, fixed_abs, tag = 'smem constant byte address 0x4 - core index']
  #allocation1 [shape = 'u32[144,128]{1,0:T(1,128)}', space=vmem, size = 0x12000, scoped, tag = 'internal scratch']
  #allocation2 [shape = 'bf16[2,256,128]{2,1,0:T(8,128)(2,1)}', space=vmem, size = 0x20000, scoped, tag = 'scratch operand']
  #allocation3 [shape = 'f32[256,128]{1,0:T(8,128)}', space=vmem, size = 0x20000, scoped, tag = 'scratch operand']
  %s0 = inlined_call_operand.hbm [shape: bf16[256,256], index: 0, kind: input, shape index: {}]
  %s1 = inlined_call_operand.hbm [shape: f32[256,128], index: 1, kind: input, shape index: {}]
  %s2 = inlined_call_operand.hbm [shape: f32[4,256,128], index: 2, kind: output, shape index: {0}]
  %s3 = inlined_call_operand.hbm [shape: f32[256,128], index: 3, kind: output, shape index: {1}]
  %4 = xla_tuple %s2, %s3
  %s5 = sld [smem:[#allocation0]]
  $region81: #{tpu_custom_call.1} parent=0
    _
  %s7 = ssub.s32 1, %s5
  %s8 = scalar_select 0, %s7, %s5
  $region1: #{tpu_custom_call.1} parent=0
    #allocation4 [shape = 'u8[131072]{0}', space=vmem, size = 0x20000, scoped, tag = 'input window, operand 0, single buffered']
    #allocation5 [shape = 's32[2]{0}', space=sflag, size = 0x8, scoped, tag = 'scoped memory for tpu_custom_call.1']
    #allocation6 [shape = 's32[2]{0}', space=sflag, size = 0x8, scoped, tag = 'scoped memory for tpu_custom_call.1']
    #allocation7 [shape = 'u8[131072]{0}', space=vmem, size = 0x20000, scoped, tag = 'input window, operand 1, single buffered']
    #allocation8 [shape = 's32[1]{0}', space=sflag, size = 0x4, scoped, tag = 'scoped memory for tpu_custom_call.1']
    #allocation9 [shape = 'u8[131072]{0}', space=vmem, size = 0x20000, scoped, tag = 'output window, operand 0']
    #allocation10 [shape = 'u8[131072]{0}', space=vmem, size = 0x20000, scoped, tag = 'output window, operand 1']
    #allocation11 [shape = 's32[2]{0}', space=sflag, size = 0x8, scoped, tag = 'scoped memory for tpu_custom_call.1']
    %9 = vsyncpa [#allocation5], 0
    %10 = vsyncpa [#allocation8], 0
    %11 = vsyncpa [#allocation6], 0
    %s12 = scalar_lea.sflag [#allocation6], 1
    %13 = vsyncpa %s12, 0
    %14 = vsyncpa [#allocation11], 0
    %s15 = scalar_lea.sflag [#allocation11], 1
    %16 = vsyncpa %s15, 0
    loop: start=0, step=1, limit=10
    $region2: #{tpu_custom_call.1} parent=1 // loop_pre_header
      _
    $region3: #{tpu_custom_call.1} parent=1 // loop_header
      %s18 = sphi 0, %s22
      %p19 = scmp.ge.s32.totalorder %s18, 10
      %s25 = sphi 0, %s37
      %s26 = sphi 0, %s33
      %s27 = sphi 0, %s25
      %s28 = sphi 0, %s26
      %s29 = sphi 0, %s27
      %s30 = sphi 0, %s28
      %s38 = sphi 0, %s38
      %s40 = sphi 0, %s38
      %s41 = sphi 0, %s40
      %s55 = sphi 0, %s41
      %s59 = sphi 0, %s59
      %s61 = sphi 0, %s59
      %s62 = sphi 0, %s61
      %s76 = sphi 0, %s62
      %s84 = sphi 0, %s86
      %s87 = sphi 0, %s84
      %s88 = sphi 0, %s87
      %s104 = sphi 0, %s88
      %s110 = sphi 0, %s112
      %s113 = sphi 0, %s110
      %s114 = sphi 0, %s113
      %s130 = sphi 0, %s114
    $region4: #{tpu_custom_call.1} parent=1 // loop_header_branch
      %21 = sbr.rel (%p19) target = $region8
    $region5: #{tpu_custom_call.1} parent=1 // loop_body
      %s23 = ssub.s32 %s18, 1
      %s24 = ssub.s32 %s18, 2
      %s31 = sadd.s32 1, %s26
      %p32 = scmp.ge.s32.totalorder %s31, 2
      %s33 = scalar_select %p32, 0, %s31
      %s34 = sadd.s32 1, %s25
      %s35 = scalar_select %p32, %s34, %s25
      %p36 = scmp.ge.s32.totalorder %s35, 4
      %s37 = scalar_select %p36, 0, %s35
      %s39 = sadd.s32 %s38, 1
      %p42 = scmp.eq.s32.totalorder %s18, 7
      %p43 = scmp.ne.s32.totalorder %s38, %s40
      %p44 = scmp.eq.s32.totalorder %s18, 0
      %p45 = por %p43, %p44
      %p46 = scmp.ne.s32.totalorder %s38, %s40
      %p47 = scmp.eq.s32.totalorder %s23, 7
      %p48 = por %p46, %p47
      %p49 = scmp.ne.s32.totalorder %s40, %s41
      %p50 = scmp.eq.s32.totalorder %s23, 0
      %p51 = por %p49, %p50
      %p52 = scmp.ne.s32.totalorder %s40, %s41
      %p53 = scmp.eq.s32.totalorder %s24, 7
      %p54 = por %p52, %p53
      %p56 = scmp.ne.s32.totalorder %s41, %s55
      %p57 = scmp.eq.s32.totalorder %s24, 0
      %p58 = por %p56, %p57
      %s60 = sadd.s32 %s59, 1
      %p63 = scmp.eq.s32.totalorder %s18, 7
      %p64 = scmp.ne.s32.totalorder %s59, %s61
      %p65 = scmp.eq.s32.totalorder %s18, 0
      %p66 = por %p64, %p65
      %p67 = scmp.ne.s32.totalorder %s59, %s61
      %p68 = scmp.eq.s32.totalorder %s23, 7
      %p69 = por %p67, %p68
      %p70 = scmp.ne.s32.totalorder %s61, %s62
      %p71 = scmp.eq.s32.totalorder %s23, 0
      %p72 = por %p70, %p71
      %p73 = scmp.ne.s32.totalorder %s61, %s62
      %p74 = scmp.eq.s32.totalorder %s24, 7
      %p75 = por %p73, %p74
      %p77 = scmp.ne.s32.totalorder %s62, %s76
      %p78 = scmp.eq.s32.totalorder %s24, 0
      %p79 = por %p77, %p78
      %s80 = ssub.s32 %s25, %s37
      %s81 = ssub.s32 %s26, %s33
      %s82 = sor.u32 %s80, %s81
      %p83 = scmp.eq.s32.totalorder %s82, 0
      %s85 = sadd.s32 %s84, 1
      %s86 = scalar_select %p83, %s84, %s85
      %p89 = pneg %p83
      %p90 = scmp.eq.s32.totalorder %s18, 7
      %p91 = por %p89, %p90
      %p92 = scmp.ne.s32.totalorder %s84, %s87
      %p93 = scmp.eq.s32.totalorder %s18, 0
      %p94 = por %p92, %p93
      %p95 = scmp.ne.s32.totalorder %s84, %s87
      %p96 = scmp.eq.s32.totalorder %s23, 7
      %p97 = por %p95, %p96
      %p98 = scmp.ne.s32.totalorder %s87, %s88
      %p99 = scmp.eq.s32.totalorder %s23, 0
      %p100 = por %p98, %p99
      %p101 = scmp.ne.s32.totalorder %s87, %s88
      %p102 = scmp.eq.s32.totalorder %s24, 7
      %p103 = por %p101, %p102
      %p105 = scmp.ne.s32.totalorder %s88, %s104
      %p106 = scmp.eq.s32.totalorder %s24, 0
      %p107 = por %p105, %p106
      %s108 = ssub.s32 %s26, %s33
      %p109 = scmp.eq.s32.totalorder %s108, 0
      %s111 = sadd.s32 %s110, 1
      %s112 = scalar_select %p109, %s110, %s111
      %p115 = pneg %p109
      %p116 = scmp.eq.s32.totalorder %s18, 7
      %p117 = por %p115, %p116
      %p118 = scmp.ne.s32.totalorder %s110, %s113
      %p119 = scmp.eq.s32.totalorder %s18, 0
      %p120 = por %p118, %p119
      %p121 = scmp.ne.s32.totalorder %s110, %s113
      %p122 = scmp.eq.s32.totalorder %s23, 7
      %p123 = por %p121, %p122
      %p124 = scmp.ne.s32.totalorder %s113, %s114
      %p125 = scmp.eq.s32.totalorder %s23, 0
      %p126 = por %p124, %p125
      %p127 = scmp.ne.s32.totalorder %s113, %s114
      %p128 = scmp.eq.s32.totalorder %s24, 7
      %p129 = por %p127, %p128
      %p131 = scmp.ne.s32.totalorder %s114, %s130
      %p132 = scmp.eq.s32.totalorder %s24, 0
      %p133 = por %p131, %p132
      %p134 = scmp.le.s32.totalorder 1, %s18
      %p135 = scmp.lt.s32.totalorder %s18, 9
      %p136 = pnand %p134, %p135
      %p137 = pneg %p136
      // Predicated region
      $region9: #{tpu_custom_call.1} parent=5 // pred_check
        _
      $region10: #{tpu_custom_call.1} parent=5 // pred_check_branch
        %139 = sbr.rel (%p136) target = $region12
      $region11: #{tpu_custom_call.1} parent=5 // pred_region
        %s140 = ssub.s32 %s18, 1
        // Predicated region
        $region13: #{tpu_custom_call.1} parent=11 // pred_check
          %p141 = pneg %p51
        $region14: #{tpu_custom_call.1} parent=11 // pred_check_branch
          %143 = sbr.rel (%p141) target = $region16
        $region15: #{tpu_custom_call.1} parent=11 // pred_region
          %s145 = ssub.s32 4096, 4096
          %146 = vsyncadd [#allocation5], %s145
          %s147 = sshll.u32 [#allocation4], 4
          %s148 = int_to_ptr.vmem [resolvable:$true] %s147
          %153 = dma.hbm_to_vmem [thread:$0]  %s0, 4096, %s148, [#allocation5], 128, 128, 8
        $region16: #{tpu_custom_call.1} parent=11 // pred_fallthru
          _
        // Predicated region
        $region17: #{tpu_custom_call.1} parent=11 // pred_check
          %p154 = pneg %p72
        $region18: #{tpu_custom_call.1} parent=11 // pred_check_branch
          %156 = sbr.rel (%p154) target = $region20
        $region19: #{tpu_custom_call.1} parent=11 // pred_region
          %s158 = ssub.s32 4096, 4096
          %159 = vsyncadd [#allocation8], %s158
          %s160 = sshll.u32 [#allocation7], 4
          %s161 = int_to_ptr.vmem [resolvable:$true] %s160
          %166 = dma.hbm_to_vmem [thread:$0]  %s1, 4096, %s161, [#allocation8], 128, 128, 8
        $region20: #{tpu_custom_call.1} parent=11 // pred_fallthru
          _
      $region12: #{tpu_custom_call.1} parent=5 // pred_fallthru
        _
      %p167 = scmp.lt.s32.totalorder %s18, 8
      // Predicated region
      $region21: #{tpu_custom_call.1} parent=5 // pred_check
        %p168 = pneg %p167
      $region22: #{tpu_custom_call.1} parent=5 // pred_check_branch
        %170 = sbr.rel (%p168) target = $region24
      $region23: #{tpu_custom_call.1} parent=5 // pred_region
        _
      $region24: #{tpu_custom_call.1} parent=5 // pred_fallthru
        _
      %p171 = scmp.le.s32.totalorder 1, %s18
      %p172 = scmp.lt.s32.totalorder %s18, 9
      %p173 = pnand %p171, %p172
      %p174 = pneg %p173
      // Predicated region
      $region25: #{tpu_custom_call.1} parent=5 // pred_check
        _
      $region26: #{tpu_custom_call.1} parent=5 // pred_check_branch
        %176 = sbr.rel (%p173) target = $region28
      $region27: #{tpu_custom_call.1} parent=5 // pred_region
        %s177 = ssub.s32 %s18, 1
        // Predicated region
        $region29: #{tpu_custom_call.1} parent=27 // pred_check
          %p178 = pneg %p51
        $region30: #{tpu_custom_call.1} parent=27 // pred_check_branch
          %180 = sbr.rel (%p178) target = $region32
        $region31: #{tpu_custom_call.1} parent=27 // pred_region
          %181 = dma.done [#allocation5], 4096
        $region32: #{tpu_custom_call.1} parent=27 // pred_fallthru
          _
        // Predicated region
        $region33: #{tpu_custom_call.1} parent=27 // pred_check
          %p182 = pneg %p72
        $region34: #{tpu_custom_call.1} parent=27 // pred_check_branch
          %184 = sbr.rel (%p182) target = $region36
        $region35: #{tpu_custom_call.1} parent=27 // pred_region
          %185 = dma.done [#allocation8], 4096
        $region36: #{tpu_custom_call.1} parent=27 // pred_fallthru
          _
        %p186 = pneg %p51
        %p187 = pneg %p48
        %p188 = pneg %p72
        %p189 = pneg %p69
        %p190 = pneg %p100
        %p191 = pneg %p97
        %s192 = sand.u32 %s87, 1
        %s193 = scalar_lea.sflag [#allocation6], %s192
        %s194 = sand.u32 %s87, 1
        %s195 = smul.addr %s194, 128
        %s196 = scalar_lea.vmem [#allocation9], %s195
        %p197 = pneg %p126
        %p198 = pneg %p123
        %s199 = sand.u32 %s113, 1
        %s200 = scalar_lea.sflag [#allocation11], %s199
        %s201 = sand.u32 %s113, 1
        %s202 = smul.addr %s201, 128
        %s203 = scalar_lea.vmem [#allocation10], %s202
        %s204 = smul.u32 16, %s28
        %s205 = smul.u32 16, %s28
        %s207 = smul.u32 %s28, 128
        %p208 = scmp.eq.s32.totalorder %s27, 0
        %p209 = scmp.eq.s32.totalorder %s28, 0
        %p210 = pnand %p208, %p209
        %p211 = pneg %p210
        // Predicated region
        $region37: #{tpu_custom_call.1} parent=27 // pred_check
          _
        $region38: #{tpu_custom_call.1} parent=27 // pred_check_branch
          %213 = sbr.rel (%p210) target = $region40
        $region39: #{tpu_custom_call.1} parent=27 // pred_region
          %v214 = vld [vmem:[#allocation7] sm:$0xff]
          %v215 = vld [vmem:[#allocation7 + $0x8] sm:$0xff]
          %v216 = vld [vmem:[#allocation7 + $0x10] sm:$0xff]
          %v217 = vld [vmem:[#allocation7 + $0x18] sm:$0xff]
          %v218 = vld [vmem:[#allocation7 + $0x20] sm:$0xff]
          %v219 = vld [vmem:[#allocation7 + $0x28] sm:$0xff]
          %v220 = vld [vmem:[#allocation7 + $0x30] sm:$0xff]
          %v221 = vld [vmem:[#allocation7 + $0x38] sm:$0xff]
          %v222 = vld [vmem:[#allocation7 + $0x40] sm:$0xff]
          %v223 = vld [vmem:[#allocation7 + $0x48] sm:$0xff]
          %v224 = vld [vmem:[#allocation7 + $0x50] sm:$0xff]
          %v225 = vld [vmem:[#allocation7 + $0x58] sm:$0xff]
          %v226 = vld [vmem:[#allocation7 + $0x60] sm:$0xff]
          %v227 = vld [vmem:[#allocation7 + $0x68] sm:$0xff]
          %v228 = vld [vmem:[#allocation7 + $0x70] sm:$0xff]
          %v229 = vld [vmem:[#allocation7 + $0x78] sm:$0xff]
          %v230 = vld [vmem:[#allocation7 + $0x80] sm:$0xff]
          %v231 = vld [vmem:[#allocation7 + $0x88] sm:$0xff]
          %v232 = vld [vmem:[#allocation7 + $0x90] sm:$0xff]
          %v233 = vld [vmem:[#allocation7 + $0x98] sm:$0xff]
          %v234 = vld [vmem:[#allocation7 + $0xa0] sm:$0xff]
          %v235 = vld [vmem:[#allocation7 + $0xa8] sm:$0xff]
          %v236 = vld [vmem:[#allocation7 + $0xb0] sm:$0xff]
          %v237 = vld [vmem:[#allocation7 + $0xb8] sm:$0xff]
          %v238 = vld [vmem:[#allocation7 + $0xc0] sm:$0xff]
          %v239 = vld [vmem:[#allocation7 + $0xc8] sm:$0xff]
          %v240 = vld [vmem:[#allocation7 + $0xd0] sm:$0xff]
          %v241 = vld [vmem:[#allocation7 + $0xd8] sm:$0xff]
          %v242 = vld [vmem:[#allocation7 + $0xe0] sm:$0xff]
          %v243 = vld [vmem:[#allocation7 + $0xe8] sm:$0xff]
          %v244 = vld [vmem:[#allocation7 + $0xf0] sm:$0xff]
          %v245 = vld [vmem:[#allocation7 + $0xf8] sm:$0xff]
          %v246 = vpack.c.bf16 %v215, %v214
          %v247 = vpack.c.bf16 %v217, %v216
          %v248 = vpack.c.bf16 %v219, %v218
          %v249 = vpack.c.bf16 %v221, %v220
          %v250 = vpack.c.bf16 %v223, %v222
          %v251 = vpack.c.bf16 %v225, %v224
          %v252 = vpack.c.bf16 %v227, %v226
          %v253 = vpack.c.bf16 %v229, %v228
          %v254 = vpack.c.bf16 %v231, %v230
          %v255 = vpack.c.bf16 %v233, %v232
          %v256 = vpack.c.bf16 %v235, %v234
          %v257 = vpack.c.bf16 %v237, %v236
          %v258 = vpack.c.bf16 %v239, %v238
          %v259 = vpack.c.bf16 %v241, %v240
          %v260 = vpack.c.bf16 %v243, %v242
          %v261 = vpack.c.bf16 %v245, %v244
          %v278 = vunpack.c.l.b16 %v246
          %v279 = vunpack.c.h.b16 %v246
          %v280 = vunpack.c.l.b16 %v247
          %v281 = vunpack.c.h.b16 %v247
          %v282 = vunpack.c.l.b16 %v248
          %v283 = vunpack.c.h.b16 %v248
          %v284 = vunpack.c.l.b16 %v249
          %v285 = vunpack.c.h.b16 %v249
          %v286 = vunpack.c.l.b16 %v250
          %v287 = vunpack.c.h.b16 %v250
          %v288 = vunpack.c.l.b16 %v251
          %v289 = vunpack.c.h.b16 %v251
          %v290 = vunpack.c.l.b16 %v252
          %v291 = vunpack.c.h.b16 %v252
          %v292 = vunpack.c.l.b16 %v253
          %v293 = vunpack.c.h.b16 %v253
          %v294 = vunpack.c.l.b16 %v254
          %v295 = vunpack.c.h.b16 %v254
          %v296 = vunpack.c.l.b16 %v255
          %v297 = vunpack.c.h.b16 %v255
          %v298 = vunpack.c.l.b16 %v256
          %v299 = vunpack.c.h.b16 %v256
          %v300 = vunpack.c.l.b16 %v257
          %v301 = vunpack.c.h.b16 %v257
          %v302 = vunpack.c.l.b16 %v258
          %v303 = vunpack.c.h.b16 %v258
          %v304 = vunpack.c.l.b16 %v259
          %v305 = vunpack.c.h.b16 %v259
          %v306 = vunpack.c.l.b16 %v260
          %v307 = vunpack.c.h.b16 %v260
          %v308 = vunpack.c.l.b16 %v261
          %v309 = vunpack.c.h.b16 %v261
          %v310 = vpack.c.b16 %v278, %v278
          %v311 = vpack.c.b16 %v279, %v279
          %v312 = vpack.c.b16 %v280, %v280
          %v313 = vpack.c.b16 %v281, %v281
          %v314 = vpack.c.b16 %v282, %v282
          %v315 = vpack.c.b16 %v283, %v283
          %v316 = vpack.c.b16 %v284, %v284
          %v317 = vpack.c.b16 %v285, %v285
          %v318 = vpack.c.b16 %v286, %v286
          %v319 = vpack.c.b16 %v287, %v287
          %v320 = vpack.c.b16 %v288, %v288
          %v321 = vpack.c.b16 %v289, %v289
          %v322 = vpack.c.b16 %v290, %v290
          %v323 = vpack.c.b16 %v291, %v291
          %v324 = vpack.c.b16 %v292, %v292
          %v325 = vpack.c.b16 %v293, %v293
          %v326 = vpack.c.b16 %v294, %v294
          %v327 = vpack.c.b16 %v295, %v295
          %v328 = vpack.c.b16 %v296, %v296
          %v329 = vpack.c.b16 %v297, %v297
          %v330 = vpack.c.b16 %v298, %v298
          %v331 = vpack.c.b16 %v299, %v299
          %v332 = vpack.c.b16 %v300, %v300
          %v333 = vpack.c.b16 %v301, %v301
          %v334 = vpack.c.b16 %v302, %v302
          %v335 = vpack.c.b16 %v303, %v303
          %v336 = vpack.c.b16 %v304, %v304
          %v337 = vpack.c.b16 %v305, %v305
          %v338 = vpack.c.b16 %v306, %v306
          %v339 = vpack.c.b16 %v307, %v307
          %v340 = vpack.c.b16 %v308, %v308
          %v341 = vpack.c.b16 %v309, %v309
          %s374 = scalar_lea.vmem [#allocation2], 128
          %375 = vst [vmem:[%s374] sm:$0xf] %v310
          %376 = vst [vmem:[%s374 + $0x4] sm:$0xf] %v311
          %377 = vst [vmem:[%s374 + $0x8] sm:$0xf] %v312
          %378 = vst [vmem:[%s374 + $0xc] sm:$0xf] %v313
          %379 = vst [vmem:[%s374 + $0x10] sm:$0xf] %v314
          %380 = vst [vmem:[%s374 + $0x14] sm:$0xf] %v315
          %381 = vst [vmem:[%s374 + $0x18] sm:$0xf] %v316
          %382 = vst [vmem:[%s374 + $0x1c] sm:$0xf] %v317
          %383 = vst [vmem:[%s374 + $0x20] sm:$0xf] %v318
          %384 = vst [vmem:[%s374 + $0x24] sm:$0xf] %v319
          %385 = vst [vmem:[%s374 + $0x28] sm:$0xf] %v320
          %386 = vst [vmem:[%s374 + $0x2c] sm:$0xf] %v321
          %387 = vst [vmem:[%s374 + $0x30] sm:$0xf] %v322
          %388 = vst [vmem:[%s374 + $0x34] sm:$0xf] %v323
          %389 = vst [vmem:[%s374 + $0x38] sm:$0xf] %v324
          %390 = vst [vmem:[%s374 + $0x3c] sm:$0xf] %v325
          %391 = vst [vmem:[%s374 + $0x40] sm:$0xf] %v326
          %392 = vst [vmem:[%s374 + $0x44] sm:$0xf] %v327
          %393 = vst [vmem:[%s374 + $0x48] sm:$0xf] %v328
          %394 = vst [vmem:[%s374 + $0x4c] sm:$0xf] %v329
          %395 = vst [vmem:[%s374 + $0x50] sm:$0xf] %v330
          %396 = vst [vmem:[%s374 + $0x54] sm:$0xf] %v331
          %397 = vst [vmem:[%s374 + $0x58] sm:$0xf] %v332
          %398 = vst [vmem:[%s374 + $0x5c] sm:$0xf] %v333
          %399 = vst [vmem:[%s374 + $0x60] sm:$0xf] %v334
          %400 = vst [vmem:[%s374 + $0x64] sm:$0xf] %v335
          %401 = vst [vmem:[%s374 + $0x68] sm:$0xf] %v336
          %402 = vst [vmem:[%s374 + $0x6c] sm:$0xf] %v337
          %403 = vst [vmem:[%s374 + $0x70] sm:$0xf] %v338
          %404 = vst [vmem:[%s374 + $0x74] sm:$0xf] %v339
          %405 = vst [vmem:[%s374 + $0x78] sm:$0xf] %v340
          %406 = vst [vmem:[%s374 + $0x7c] sm:$0xf] %v341
        $region40: #{tpu_custom_call.1} parent=27 // pred_fallthru
          _
        %p407 = scmp.lt.s32.totalorder %s27, 0
        %s408 = ssub.s32 0, %s27
        %s409 = scalar_select %p407, %s408, %s27
        %s410 = sand.u32 %s409, 1
        %s411 = ssub.s32 0, %s410
        %s412 = scalar_select %p407, %s411, %s410
        %p413 = scmp.ne.s32.totalorder %s412, 0
        %p414 = scmp.lt.s32.totalorder %s412, 0
        %p415 = pnand %p414, %p413
        %p416 = pneg %p415
        %s417 = sadd.s32 %s412, 2
        %s418 = scalar_select %p416, %s417, %s412
        %s419 = ssub.s32 1, %s418
        %s420 = smul.u32 %s419, 32
        %s421 = smul.addr %s420, 4
        %s422 = scalar_lea.vmem [#allocation2], %s421
        %v423 = vld [vmem:[%s422] sm:$0xf]
        %v424 = vld [vmem:[%s422 + $0x4] sm:$0xf]
        %v425 = vld [vmem:[%s422 + $0x8] sm:$0xf]
        %v426 = vld [vmem:[%s422 + $0xc] sm:$0xf]
        %v427 = vld [vmem:[%s422 + $0x10] sm:$0xf]
        %v428 = vld [vmem:[%s422 + $0x14] sm:$0xf]
        %v429 = vld [vmem:[%s422 + $0x18] sm:$0xf]
        %v430 = vld [vmem:[%s422 + $0x1c] sm:$0xf]
        %v431 = vld [vmem:[%s422 + $0x20] sm:$0xf]
        %v432 = vld [vmem:[%s422 + $0x24] sm:$0xf]
        %v433 = vld [vmem:[%s422 + $0x28] sm:$0xf]
        %v434 = vld [vmem:[%s422 + $0x2c] sm:$0xf]
        %v435 = vld [vmem:[%s422 + $0x30] sm:$0xf]
        %v436 = vld [vmem:[%s422 + $0x34] sm:$0xf]
        %v437 = vld [vmem:[%s422 + $0x38] sm:$0xf]
        %v438 = vld [vmem:[%s422 + $0x3c] sm:$0xf]
        %v439 = vld [vmem:[%s422 + $0x40] sm:$0xf]
        %v440 = vld [vmem:[%s422 + $0x44] sm:$0xf]
        %v441 = vld [vmem:[%s422 + $0x48] sm:$0xf]
        %v442 = vld [vmem:[%s422 + $0x4c] sm:$0xf]
        %v443 = vld [vmem:[%s422 + $0x50] sm:$0xf]
        %v444 = vld [vmem:[%s422 + $0x54] sm:$0xf]
        %v445 = vld [vmem:[%s422 + $0x58] sm:$0xf]
        %v446 = vld [vmem:[%s422 + $0x5c] sm:$0xf]
        %v447 = vld [vmem:[%s422 + $0x60] sm:$0xf]
        %v448 = vld [vmem:[%s422 + $0x64] sm:$0xf]
        %v449 = vld [vmem:[%s422 + $0x68] sm:$0xf]
        %v450 = vld [vmem:[%s422 + $0x6c] sm:$0xf]
        %v451 = vld [vmem:[%s422 + $0x70] sm:$0xf]
        %v452 = vld [vmem:[%s422 + $0x74] sm:$0xf]
        %v453 = vld [vmem:[%s422 + $0x78] sm:$0xf]
        %v454 = vld [vmem:[%s422 + $0x7c] sm:$0xf]
        %s455 = sshra.s32 %s207, 3
        %s456 = sand.u32 %s207, 7
        %s457 = smul.u32 %s455, 2
        %s458 = smul.addr %s457, 4
        %s459 = scalar_lea.vmem [#allocation4], %s458
        %v460 = vld [vmem:[%s459] sm:$0xff]
        %v461 = vld [vmem:[%s459 + $0x8] sm:$0xff]
        %v462 = vld [vmem:[%s459 + $0x10] sm:$0xff]
        %v463 = vld [vmem:[%s459 + $0x18] sm:$0xff]
        %v464 = vld [vmem:[%s459 + $0x20] sm:$0xff]
        %v465 = vld [vmem:[%s459 + $0x28] sm:$0xff]
        %v466 = vld [vmem:[%s459 + $0x30] sm:$0xff]
        %v467 = vld [vmem:[%s459 + $0x38] sm:$0xff]
        %v468 = vld [vmem:[%s459 + $0x40] sm:$0xff]
        %v469 = vld [vmem:[%s459 + $0x48] sm:$0xff]
        %v470 = vld [vmem:[%s459 + $0x50] sm:$0xff]
        %v471 = vld [vmem:[%s459 + $0x58] sm:$0xff]
        %v472 = vld [vmem:[%s459 + $0x60] sm:$0xff]
        %v473 = vld [vmem:[%s459 + $0x68] sm:$0xff]
        %v474 = vld [vmem:[%s459 + $0x70] sm:$0xff]
        %v475 = vld [vmem:[%s459 + $0x78] sm:$0xff]
        %v492 = vunpack.c.l.b16 %v460
        %v493 = vunpack.c.h.b16 %v460
        %v494 = vunpack.c.l.b16 %v461
        %v495 = vunpack.c.h.b16 %v461
        %v496 = vunpack.c.l.b16 %v462
        %v497 = vunpack.c.h.b16 %v462
        %v498 = vunpack.c.l.b16 %v463
        %v499 = vunpack.c.h.b16 %v463
        %v500 = vunpack.c.l.b16 %v464
        %v501 = vunpack.c.h.b16 %v464
        %v502 = vunpack.c.l.b16 %v465
        %v503 = vunpack.c.h.b16 %v465
        %v504 = vunpack.c.l.b16 %v466
        %v505 = vunpack.c.h.b16 %v466
        %v506 = vunpack.c.l.b16 %v467
        %v507 = vunpack.c.h.b16 %v467
        %v508 = vunpack.c.l.b16 %v468
        %v509 = vunpack.c.h.b16 %v468
        %v510 = vunpack.c.l.b16 %v469
        %v511 = vunpack.c.h.b16 %v469
        %v512 = vunpack.c.l.b16 %v470
        %v513 = vunpack.c.h.b16 %v470
        %v514 = vunpack.c.l.b16 %v471
        %v515 = vunpack.c.h.b16 %v471
        %v516 = vunpack.c.l.b16 %v472
        %v517 = vunpack.c.h.b16 %v472
        %v518 = vunpack.c.l.b16 %v473
        %v519 = vunpack.c.h.b16 %v473
        %v520 = vunpack.c.l.b16 %v474
        %v521 = vunpack.c.h.b16 %v474
        %v522 = vunpack.c.l.b16 %v475
        %v523 = vunpack.c.h.b16 %v475
        %v524 = vpack.c.b16 %v494, %v492
        %v525 = vpack.c.b16 %v495, %v493
        %v526 = vpack.c.b16 %v498, %v496
        %v527 = vpack.c.b16 %v499, %v497
        %v528 = vpack.c.b16 %v502, %v500
        %v529 = vpack.c.b16 %v503, %v501
        %v530 = vpack.c.b16 %v506, %v504
        %v531 = vpack.c.b16 %v507, %v505
        %v532 = vpack.c.b16 %v510, %v508
        %v533 = vpack.c.b16 %v511, %v509
        %v534 = vpack.c.b16 %v514, %v512
        %v535 = vpack.c.b16 %v515, %v513
        %v536 = vpack.c.b16 %v518, %v516
        %v537 = vpack.c.b16 %v519, %v517
        %v538 = vpack.c.b16 %v522, %v520
        %v539 = vpack.c.b16 %v523, %v521
        %v588 = vunpack.c.l.b16 %v423
        %v589 = vunpack.c.l.b16 %v424
        %v590 = vunpack.c.l.b16 %v425
        %v591 = vunpack.c.l.b16 %v426
        %v592 = vunpack.c.l.b16 %v427
        %v593 = vunpack.c.l.b16 %v428
        %v594 = vunpack.c.l.b16 %v429
        %v595 = vunpack.c.l.b16 %v430
        %v596 = vunpack.c.l.b16 %v431
        %v597 = vunpack.c.l.b16 %v432
        %v598 = vunpack.c.l.b16 %v433
        %v599 = vunpack.c.l.b16 %v434
        %v600 = vunpack.c.l.b16 %v435
        %v601 = vunpack.c.l.b16 %v436
        %v602 = vunpack.c.l.b16 %v437
        %v603 = vunpack.c.l.b16 %v438
        %v604 = vunpack.c.l.b16 %v439
        %v605 = vunpack.c.l.b16 %v440
        %v606 = vunpack.c.l.b16 %v441
        %v607 = vunpack.c.l.b16 %v442
        %v608 = vunpack.c.l.b16 %v443
        %v609 = vunpack.c.l.b16 %v444
        %v610 = vunpack.c.l.b16 %v445
        %v611 = vunpack.c.l.b16 %v446
        %v612 = vunpack.c.l.b16 %v447
        %v613 = vunpack.c.l.b16 %v448
        %v614 = vunpack.c.l.b16 %v449
        %v615 = vunpack.c.l.b16 %v450
        %v616 = vunpack.c.l.b16 %v451
        %v617 = vunpack.c.l.b16 %v452
        %v618 = vunpack.c.l.b16 %v453
        %v619 = vunpack.c.l.b16 %v454
        %v620 = vpack.c.b16 %v589, %v588
        %v621 = vpack.c.b16 %v591, %v590
        %v622 = vpack.c.b16 %v593, %v592
        %v623 = vpack.c.b16 %v595, %v594
        %v624 = vpack.c.b16 %v597, %v596
        %v625 = vpack.c.b16 %v599, %v598
        %v626 = vpack.c.b16 %v601, %v600
        %v627 = vpack.c.b16 %v603, %v602
        %v628 = vpack.c.b16 %v605, %v604
        %v629 = vpack.c.b16 %v607, %v606
        %v630 = vpack.c.b16 %v609, %v608
        %v631 = vpack.c.b16 %v611, %v610
        %v632 = vpack.c.b16 %v613, %v612
        %v633 = vpack.c.b16 %v615, %v614
        %v634 = vpack.c.b16 %v617, %v616
        %v635 = vpack.c.b16 %v619, %v618
        %652 = vmatprep.subr.bf16.mxu0 0
        %653 = vmatpush1.bf16.msra.mxu0 %v627
        %654 = vmatprep.subr.bf16.mxu0 0
        %655 = vmatpush1.bf16.msra.mxu0 %v626
        %656 = vmatprep.subr.bf16.mxu0 0
        %657 = vmatpush1.bf16.msra.mxu0 %v625
        %658 = vmatprep.subr.bf16.mxu0 0
        %659 = vmatpush1.bf16.msra.mxu0 %v624
        %660 = vmatprep.subr.bf16.mxu0 0
        %661 = vmatpush1.bf16.msra.mxu0 %v623
        %662 = vmatprep.subr.bf16.mxu0 0
        %663 = vmatpush1.bf16.msra.mxu0 %v622
        %664 = vmatprep.subr.bf16.mxu0 0
        %665 = vmatpush1.bf16.msra.mxu0 %v621
        %666 = vmatprep.subr.bf16.mxu0 0
        %667 = vmatpush1.bf16.msra.mxu0 %v620
        %668 = vmatprep.subr.bf16.mxu0 0
        %669 = vmatpush2.bf16.msra.mxu0 %v635
        %670 = vmatprep.subr.bf16.mxu0 0
        %671 = vmatpush2.bf16.msra.mxu0 %v634
        %672 = vmatprep.subr.bf16.mxu0 0
        %673 = vmatpush2.bf16.msra.mxu0 %v633
        %674 = vmatprep.subr.bf16.mxu0 0
        %675 = vmatpush2.bf16.msra.mxu0 %v632
        %676 = vmatprep.subr.bf16.mxu0 0
        %677 = vmatpush2.bf16.msra.mxu0 %v631
        %678 = vmatprep.subr.bf16.mxu0 0
        %679 = vmatpush2.bf16.msra.mxu0 %v630
        %680 = vmatprep.subr.bf16.mxu0 0
        %681 = vmatpush2.bf16.msra.mxu0 %v629
        %682 = vmatprep.subr.bf16.mxu0 0
        %683 = vmatpush2.bf16.msra.mxu0 %v628
        %684 = vmatprep.mubr.bf16.mxu0 %v525
        %685 = vmatmul.mubr.bf16.gmra.mxu0 %v524
        %v686 = vpop.f32.mrf.mxu0
        %v687 = vadd.f32 0.0, %v686
        %v688 = vpop.f32.mrf.mxu0
        %v689 = vpop.f32.mrf.mxu0
        %v690 = vadd.f32 0.0, %v689
        %v691 = vpop.f32.mrf.mxu0
        %692 = vmatprep.mubr.bf16.mxu0 %v527
        %693 = vmatmul.mubr.bf16.gmra.mxu0 %v526
        %v694 = vpop.f32.mrf.mxu0
        %v695 = vadd.f32 0.0, %v694
        %v696 = vpop.f32.mrf.mxu0
        %v697 = vpop.f32.mrf.mxu0
        %v698 = vadd.f32 0.0, %v697
        %v699 = vpop.f32.mrf.mxu0
        %700 = vmatprep.mubr.bf16.mxu0 %v529
        %701 = vmatmul.mubr.bf16.gmra.mxu0 %v528
        %v702 = vpop.f32.mrf.mxu0
        %v703 = vadd.f32 0.0, %v702
        %v704 = vpop.f32.mrf.mxu0
        %v705 = vpop.f32.mrf.mxu0
        %v706 = vadd.f32 0.0, %v705
        %v707 = vpop.f32.mrf.mxu0
        %708 = vmatprep.mubr.bf16.mxu0 %v531
        %709 = vmatmul.mubr.bf16.gmra.mxu0 %v530
        %v710 = vpop.f32.mrf.mxu0
        %v711 = vadd.f32 0.0, %v710
        %v712 = vpop.f32.mrf.mxu0
        %v713 = vpop.f32.mrf.mxu0
        %v714 = vadd.f32 0.0, %v713
        %v715 = vpop.f32.mrf.mxu0
        %716 = vmatprep.mubr.bf16.mxu0 %v533
        %717 = vmatmul.mubr.bf16.gmra.mxu0 %v532
        %v718 = vpop.f32.mrf.mxu0
        %v719 = vadd.f32 0.0, %v718
        %v720 = vpop.f32.mrf.mxu0
        %v721 = vpop.f32.mrf.mxu0
        %v722 = vadd.f32 0.0, %v721
        %v723 = vpop.f32.mrf.mxu0
        %724 = vmatprep.mubr.bf16.mxu0 %v535
        %725 = vmatmul.mubr.bf16.gmra.mxu0 %v534
        %v726 = vpop.f32.mrf.mxu0
        %v727 = vadd.f32 0.0, %v726
        %v728 = vpop.f32.mrf.mxu0
        %v729 = vpop.f32.mrf.mxu0
        %v730 = vadd.f32 0.0, %v729
        %v731 = vpop.f32.mrf.mxu0
        %732 = vmatprep.mubr.bf16.mxu0 %v537
        %733 = vmatmul.mubr.bf16.gmra.mxu0 %v536
        %v734 = vpop.f32.mrf.mxu0
        %v735 = vadd.f32 0.0, %v734
        %v736 = vpop.f32.mrf.mxu0
        %v737 = vpop.f32.mrf.mxu0
        %v738 = vadd.f32 0.0, %v737
        %v739 = vpop.f32.mrf.mxu0
        %740 = vmatprep.mubr.bf16.mxu0 %v539
        %741 = vmatmul.mubr.bf16.gmra.mxu0 %v538
        %v742 = vpop.f32.mrf.mxu0
        %v743 = vadd.f32 0.0, %v742
        %v744 = vpop.f32.mrf.mxu0
        %v745 = vpop.f32.mrf.mxu0
        %v746 = vadd.f32 0.0, %v745
        %v747 = vpop.f32.mrf.mxu0
        %748 = vdwg.mxu0
        %v749 = vpack.c.bf16 %v690, %v687
        %v750 = vpack.c.bf16 %v698, %v695
        %v751 = vpack.c.bf16 %v706, %v703
        %v752 = vpack.c.bf16 %v714, %v711
        %v753 = vpack.c.bf16 %v722, %v719
        %v754 = vpack.c.bf16 %v730, %v727
        %v755 = vpack.c.bf16 %v738, %v735
        %v756 = vpack.c.bf16 %v746, %v743
        %p757 = scmp.eq.s32.totalorder %s418, 0
        // Predicated region
        $region41: #{tpu_custom_call.1} parent=27 // pred_check
          %p758 = pneg %p757
        $region42: #{tpu_custom_call.1} parent=27 // pred_check_branch
          %760 = sbr.rel (%p758) target = $region44
        $region43: #{tpu_custom_call.1} parent=27 // pred_region
          %v769 = vunpack.c.l.b16 %v749
          %v770 = vunpack.c.h.b16 %v749
          %v771 = vunpack.c.l.b16 %v750
          %v772 = vunpack.c.h.b16 %v750
          %v773 = vunpack.c.l.b16 %v751
          %v774 = vunpack.c.h.b16 %v751
          %v775 = vunpack.c.l.b16 %v752
          %v776 = vunpack.c.h.b16 %v752
          %v777 = vunpack.c.l.b16 %v753
          %v778 = vunpack.c.h.b16 %v753
          %v779 = vunpack.c.l.b16 %v754
          %v780 = vunpack.c.h.b16 %v754
          %v781 = vunpack.c.l.b16 %v755
          %v782 = vunpack.c.h.b16 %v755
          %v783 = vunpack.c.l.b16 %v756
          %v784 = vunpack.c.h.b16 %v756
          %v785 = vpack.c.b16 %v769, %v769
          %v786 = vpack.c.b16 %v770, %v770
          %v787 = vpack.c.b16 %v771, %v771
          %v788 = vpack.c.b16 %v772, %v772
          %v789 = vpack.c.b16 %v773, %v773
          %v790 = vpack.c.b16 %v774, %v774
          %v791 = vpack.c.b16 %v775, %v775
          %v792 = vpack.c.b16 %v776, %v776
          %v793 = vpack.c.b16 %v777, %v777
          %v794 = vpack.c.b16 %v778, %v778
          %v795 = vpack.c.b16 %v779, %v779
          %v796 = vpack.c.b16 %v780, %v780
          %v797 = vpack.c.b16 %v781, %v781
          %v798 = vpack.c.b16 %v782, %v782
          %v799 = vpack.c.b16 %v783, %v783
          %v800 = vpack.c.b16 %v784, %v784
          %s817 = smul.addr %s455, 4
          %s818 = scalar_lea.vmem [#allocation2], %s817
          %819 = vst [vmem:[%s818] sm:$0xf] %v785
          %820 = vst [vmem:[%s818 + $0x4] sm:$0xf] %v786
          %821 = vst [vmem:[%s818 + $0x8] sm:$0xf] %v787
          %822 = vst [vmem:[%s818 + $0xc] sm:$0xf] %v788
          %823 = vst [vmem:[%s818 + $0x10] sm:$0xf] %v789
          %824 = vst [vmem:[%s818 + $0x14] sm:$0xf] %v790
          %825 = vst [vmem:[%s818 + $0x18] sm:$0xf] %v791
          %826 = vst [vmem:[%s818 + $0x1c] sm:$0xf] %v792
          %827 = vst [vmem:[%s818 + $0x20] sm:$0xf] %v793
          %828 = vst [vmem:[%s818 + $0x24] sm:$0xf] %v794
          %829 = vst [vmem:[%s818 + $0x28] sm:$0xf] %v795
          %830 = vst [vmem:[%s818 + $0x2c] sm:$0xf] %v796
          %831 = vst [vmem:[%s818 + $0x30] sm:$0xf] %v797
          %832 = vst [vmem:[%s818 + $0x34] sm:$0xf] %v798
          %833 = vst [vmem:[%s818 + $0x38] sm:$0xf] %v799
          %834 = vst [vmem:[%s818 + $0x3c] sm:$0xf] %v800
        $region44: #{tpu_custom_call.1} parent=27 // pred_fallthru
          _
        %p835 = scmp.eq.s32.totalorder %s418, 1
        // Predicated region
        $region45: #{tpu_custom_call.1} parent=27 // pred_check
          %p836 = pneg %p835
        $region46: #{tpu_custom_call.1} parent=27 // pred_check_branch
          %838 = sbr.rel (%p836) target = $region48
        $region47: #{tpu_custom_call.1} parent=27 // pred_region
          %v847 = vunpack.c.l.b16 %v749
          %v848 = vunpack.c.h.b16 %v749
          %v849 = vunpack.c.l.b16 %v750
          %v850 = vunpack.c.h.b16 %v750
          %v851 = vunpack.c.l.b16 %v751
          %v852 = vunpack.c.h.b16 %v751
          %v853 = vunpack.c.l.b16 %v752
          %v854 = vunpack.c.h.b16 %v752
          %v855 = vunpack.c.l.b16 %v753
          %v856 = vunpack.c.h.b16 %v753
          %v857 = vunpack.c.l.b16 %v754
          %v858 = vunpack.c.h.b16 %v754
          %v859 = vunpack.c.l.b16 %v755
          %v860 = vunpack.c.h.b16 %v755
          %v861 = vunpack.c.l.b16 %v756
          %v862 = vunpack.c.h.b16 %v756
          %v863 = vpack.c.b16 %v847, %v847
          %v864 = vpack.c.b16 %v848, %v848
          %v865 = vpack.c.b16 %v849, %v849
          %v866 = vpack.c.b16 %v850, %v850
          %v867 = vpack.c.b16 %v851, %v851
          %v868 = vpack.c.b16 %v852, %v852
          %v869 = vpack.c.b16 %v853, %v853
          %v870 = vpack.c.b16 %v854, %v854
          %v871 = vpack.c.b16 %v855, %v855
          %v872 = vpack.c.b16 %v856, %v856
          %v873 = vpack.c.b16 %v857, %v857
          %v874 = vpack.c.b16 %v858, %v858
          %v875 = vpack.c.b16 %v859, %v859
          %v876 = vpack.c.b16 %v860, %v860
          %v877 = vpack.c.b16 %v861, %v861
          %v878 = vpack.c.b16 %v862, %v862
          %s895 = sadd.s32 %s455, 32
          %s896 = smul.addr %s895, 4
          %s897 = scalar_lea.vmem [#allocation2], %s896
          %898 = vst [vmem:[%s897] sm:$0xf] %v863
          %899 = vst [vmem:[%s897 + $0x4] sm:$0xf] %v864
          %900 = vst [vmem:[%s897 + $0x8] sm:$0xf] %v865
          %901 = vst [vmem:[%s897 + $0xc] sm:$0xf] %v866
          %902 = vst [vmem:[%s897 + $0x10] sm:$0xf] %v867
          %903 = vst [vmem:[%s897 + $0x14] sm:$0xf] %v868
          %904 = vst [vmem:[%s897 + $0x18] sm:$0xf] %v869
          %905 = vst [vmem:[%s897 + $0x1c] sm:$0xf] %v870
          %906 = vst [vmem:[%s897 + $0x20] sm:$0xf] %v871
          %907 = vst [vmem:[%s897 + $0x24] sm:$0xf] %v872
          %908 = vst [vmem:[%s897 + $0x28] sm:$0xf] %v873
          %909 = vst [vmem:[%s897 + $0x2c] sm:$0xf] %v874
          %910 = vst [vmem:[%s897 + $0x30] sm:$0xf] %v875
          %911 = vst [vmem:[%s897 + $0x34] sm:$0xf] %v876
          %912 = vst [vmem:[%s897 + $0x38] sm:$0xf] %v877
          %913 = vst [vmem:[%s897 + $0x3c] sm:$0xf] %v878
        $region48: #{tpu_custom_call.1} parent=27 // pred_fallthru
          _
        %914 = vst [vmem:[%s196] sm:$0xff] %v687
        %915 = vst [vmem:[%s196 + $0x8] sm:$0xff] %v690
        %916 = vst [vmem:[%s196 + $0x10] sm:$0xff] %v695
        %917 = vst [vmem:[%s196 + $0x18] sm:$0xff] %v698
        %918 = vst [vmem:[%s196 + $0x20] sm:$0xff] %v703
        %919 = vst [vmem:[%s196 + $0x28] sm:$0xff] %v706
        %920 = vst [vmem:[%s196 + $0x30] sm:$0xff] %v711
        %921 = vst [vmem:[%s196 + $0x38] sm:$0xff] %v714
        %922 = vst [vmem:[%s196 + $0x40] sm:$0xff] %v719
        %923 = vst [vmem:[%s196 + $0x48] sm:$0xff] %v722
        %924 = vst [vmem:[%s196 + $0x50] sm:$0xff] %v727
        %925 = vst [vmem:[%s196 + $0x58] sm:$0xff] %v730
        %926 = vst [vmem:[%s196 + $0x60] sm:$0xff] %v735
        %927 = vst [vmem:[%s196 + $0x68] sm:$0xff] %v738
        %928 = vst [vmem:[%s196 + $0x70] sm:$0xff] %v743
        %929 = vst [vmem:[%s196 + $0x78] sm:$0xff] %v746
        // Predicated region
        $region49: #{tpu_custom_call.1} parent=27 // pred_check
          %p930 = pneg %p208
        $region50: #{tpu_custom_call.1} parent=27 // pred_check_branch
          %932 = sbr.rel (%p930) target = $region52
        $region51: #{tpu_custom_call.1} parent=27 // pred_region
          %s933 = scalar_lea.vmem [#allocation7], %s207
          %v934 = vld [vmem:[%s933] sm:$0xff]
          %v935 = vld [vmem:[%s933 + $0x8] sm:$0xff]
          %v936 = vld [vmem:[%s933 + $0x10] sm:$0xff]
          %v937 = vld [vmem:[%s933 + $0x18] sm:$0xff]
          %v938 = vld [vmem:[%s933 + $0x20] sm:$0xff]
          %v939 = vld [vmem:[%s933 + $0x28] sm:$0xff]
          %v940 = vld [vmem:[%s933 + $0x30] sm:$0xff]
          %v941 = vld [vmem:[%s933 + $0x38] sm:$0xff]
          %v942 = vld [vmem:[%s933 + $0x40] sm:$0xff]
          %v943 = vld [vmem:[%s933 + $0x48] sm:$0xff]
          %v944 = vld [vmem:[%s933 + $0x50] sm:$0xff]
          %v945 = vld [vmem:[%s933 + $0x58] sm:$0xff]
          %v946 = vld [vmem:[%s933 + $0x60] sm:$0xff]
          %v947 = vld [vmem:[%s933 + $0x68] sm:$0xff]
          %v948 = vld [vmem:[%s933 + $0x70] sm:$0xff]
          %v949 = vld [vmem:[%s933 + $0x78] sm:$0xff]
          %s950 = scalar_lea.vmem [#allocation3], %s207
          %951 = vst [vmem:[%s950] sm:$0xff] %v934
          %952 = vst [vmem:[%s950 + $0x8] sm:$0xff] %v935
          %953 = vst [vmem:[%s950 + $0x10] sm:$0xff] %v936
          %954 = vst [vmem:[%s950 + $0x18] sm:$0xff] %v937
          %955 = vst [vmem:[%s950 + $0x20] sm:$0xff] %v938
          %956 = vst [vmem:[%s950 + $0x28] sm:$0xff] %v939
          %957 = vst [vmem:[%s950 + $0x30] sm:$0xff] %v940
          %958 = vst [vmem:[%s950 + $0x38] sm:$0xff] %v941
          %959 = vst [vmem:[%s950 + $0x40] sm:$0xff] %v942
          %960 = vst [vmem:[%s950 + $0x48] sm:$0xff] %v943
          %961 = vst [vmem:[%s950 + $0x50] sm:$0xff] %v944
          %962 = vst [vmem:[%s950 + $0x58] sm:$0xff] %v945
          %963 = vst [vmem:[%s950 + $0x60] sm:$0xff] %v946
          %964 = vst [vmem:[%s950 + $0x68] sm:$0xff] %v947
          %965 = vst [vmem:[%s950 + $0x70] sm:$0xff] %v948
          %966 = vst [vmem:[%s950 + $0x78] sm:$0xff] %v949
        $region52: #{tpu_custom_call.1} parent=27 // pred_fallthru
          _
        %p967 = scmp.lt.s32.totalorder %s27, 3
        // Predicated region
        $region53: #{tpu_custom_call.1} parent=27 // pred_check
          %p968 = pneg %p967
        $region54: #{tpu_custom_call.1} parent=27 // pred_check_branch
          %970 = sbr.rel (%p968) target = $region56
        $region55: #{tpu_custom_call.1} parent=27 // pred_region
          %s971 = scalar_lea.vmem [#allocation3], %s207
          %v972 = vld [vmem:[%s971] sm:$0xff]
          %v973 = vld [vmem:[%s971 + $0x8] sm:$0xff]
          %v974 = vld [vmem:[%s971 + $0x10] sm:$0xff]
          %v975 = vld [vmem:[%s971 + $0x18] sm:$0xff]
          %v976 = vld [vmem:[%s971 + $0x20] sm:$0xff]
          %v977 = vld [vmem:[%s971 + $0x28] sm:$0xff]
          %v978 = vld [vmem:[%s971 + $0x30] sm:$0xff]
          %v979 = vld [vmem:[%s971 + $0x38] sm:$0xff]
          %v980 = vld [vmem:[%s971 + $0x40] sm:$0xff]
          %v981 = vld [vmem:[%s971 + $0x48] sm:$0xff]
          %v982 = vld [vmem:[%s971 + $0x50] sm:$0xff]
          %v983 = vld [vmem:[%s971 + $0x58] sm:$0xff]
          %v984 = vld [vmem:[%s971 + $0x60] sm:$0xff]
          %v985 = vld [vmem:[%s971 + $0x68] sm:$0xff]
          %v986 = vld [vmem:[%s971 + $0x70] sm:$0xff]
          %v987 = vld [vmem:[%s971 + $0x78] sm:$0xff]
          %v988 = vadd.f32 %v972, %v687
          %v989 = vadd.f32 %v973, %v690
          %v990 = vadd.f32 %v974, %v695
          %v991 = vadd.f32 %v975, %v698
          %v992 = vadd.f32 %v976, %v703
          %v993 = vadd.f32 %v977, %v706
          %v994 = vadd.f32 %v978, %v711
          %v995 = vadd.f32 %v979, %v714
          %v996 = vadd.f32 %v980, %v719
          %v997 = vadd.f32 %v981, %v722
          %v998 = vadd.f32 %v982, %v727
          %v999 = vadd.f32 %v983, %v730
          %v1000 = vadd.f32 %v984, %v735
          %v1001 = vadd.f32 %v985, %v738
          %v1002 = vadd.f32 %v986, %v743
          %v1003 = vadd.f32 %v987, %v746
          %1004 = vst [vmem:[%s971] sm:$0xff] %v988
          %1005 = vst [vmem:[%s971 + $0x8] sm:$0xff] %v989
          %1006 = vst [vmem:[%s971 + $0x10] sm:$0xff] %v990
          %1007 = vst [vmem:[%s971 + $0x18] sm:$0xff] %v991
          %1008 = vst [vmem:[%s971 + $0x20] sm:$0xff] %v992
          %1009 = vst [vmem:[%s971 + $0x28] sm:$0xff] %v993
          %1010 = vst [vmem:[%s971 + $0x30] sm:$0xff] %v994
          %1011 = vst [vmem:[%s971 + $0x38] sm:$0xff] %v995
          %1012 = vst [vmem:[%s971 + $0x40] sm:$0xff] %v996
          %1013 = vst [vmem:[%s971 + $0x48] sm:$0xff] %v997
          %1014 = vst [vmem:[%s971 + $0x50] sm:$0xff] %v998
          %1015 = vst [vmem:[%s971 + $0x58] sm:$0xff] %v999
          %1016 = vst [vmem:[%s971 + $0x60] sm:$0xff] %v1000
          %1017 = vst [vmem:[%s971 + $0x68] sm:$0xff] %v1001
          %1018 = vst [vmem:[%s971 + $0x70] sm:$0xff] %v1002
          %1019 = vst [vmem:[%s971 + $0x78] sm:$0xff] %v1003
        $region56: #{tpu_custom_call.1} parent=27 // pred_fallthru
          _
        %p1020 = scmp.eq.s32.totalorder %s27, 3
        // Predicated region
        $region57: #{tpu_custom_call.1} parent=27 // pred_check
          %p1021 = pneg %p1020
        $region58: #{tpu_custom_call.1} parent=27 // pred_check_branch
          %1023 = sbr.rel (%p1021) target = $region60
        $region59: #{tpu_custom_call.1} parent=27 // pred_region
          %s1024 = scalar_lea.vmem [#allocation3], %s207
          %v1025 = vld [vmem:[%s1024] sm:$0xff]
          %v1026 = vld [vmem:[%s1024 + $0x8] sm:$0xff]
          %v1027 = vld [vmem:[%s1024 + $0x10] sm:$0xff]
          %v1028 = vld [vmem:[%s1024 + $0x18] sm:$0xff]
          %v1029 = vld [vmem:[%s1024 + $0x20] sm:$0xff]
          %v1030 = vld [vmem:[%s1024 + $0x28] sm:$0xff]
          %v1031 = vld [vmem:[%s1024 + $0x30] sm:$0xff]
          %v1032 = vld [vmem:[%s1024 + $0x38] sm:$0xff]
          %v1033 = vld [vmem:[%s1024 + $0x40] sm:$0xff]
          %v1034 = vld [vmem:[%s1024 + $0x48] sm:$0xff]
          %v1035 = vld [vmem:[%s1024 + $0x50] sm:$0xff]
          %v1036 = vld [vmem:[%s1024 + $0x58] sm:$0xff]
          %v1037 = vld [vmem:[%s1024 + $0x60] sm:$0xff]
          %v1038 = vld [vmem:[%s1024 + $0x68] sm:$0xff]
          %v1039 = vld [vmem:[%s1024 + $0x70] sm:$0xff]
          %v1040 = vld [vmem:[%s1024 + $0x78] sm:$0xff]
          %v1041 = vmul.f32 %v1025, 0.25
          %v1042 = vmul.f32 %v1026, 0.25
          %v1043 = vmul.f32 %v1027, 0.25
          %v1044 = vmul.f32 %v1028, 0.25
          %v1045 = vmul.f32 %v1029, 0.25
          %v1046 = vmul.f32 %v1030, 0.25
          %v1047 = vmul.f32 %v1031, 0.25
          %v1048 = vmul.f32 %v1032, 0.25
          %v1049 = vmul.f32 %v1033, 0.25
          %v1050 = vmul.f32 %v1034, 0.25
          %v1051 = vmul.f32 %v1035, 0.25
          %v1052 = vmul.f32 %v1036, 0.25
          %v1053 = vmul.f32 %v1037, 0.25
          %v1054 = vmul.f32 %v1038, 0.25
          %v1055 = vmul.f32 %v1039, 0.25
          %v1056 = vmul.f32 %v1040, 0.25
          %1057 = vst [vmem:[%s203] sm:$0xff] %v1041
          %1058 = vst [vmem:[%s203 + $0x8] sm:$0xff] %v1042
          %1059 = vst [vmem:[%s203 + $0x10] sm:$0xff] %v1043
          %1060 = vst [vmem:[%s203 + $0x18] sm:$0xff] %v1044
          %1061 = vst [vmem:[%s203 + $0x20] sm:$0xff] %v1045
          %1062 = vst [vmem:[%s203 + $0x28] sm:$0xff] %v1046
          %1063 = vst [vmem:[%s203 + $0x30] sm:$0xff] %v1047
          %1064 = vst [vmem:[%s203 + $0x38] sm:$0xff] %v1048
          %1065 = vst [vmem:[%s203 + $0x40] sm:$0xff] %v1049
          %1066 = vst [vmem:[%s203 + $0x48] sm:$0xff] %v1050
          %1067 = vst [vmem:[%s203 + $0x50] sm:$0xff] %v1051
          %1068 = vst [vmem:[%s203 + $0x58] sm:$0xff] %v1052
          %1069 = vst [vmem:[%s203 + $0x60] sm:$0xff] %v1053
          %1070 = vst [vmem:[%s203 + $0x68] sm:$0xff] %v1054
          %1071 = vst [vmem:[%s203 + $0x70] sm:$0xff] %v1055
          %1072 = vst [vmem:[%s203 + $0x78] sm:$0xff] %v1056
        $region60: #{tpu_custom_call.1} parent=27 // pred_fallthru
          _
        %s1073 = sand.u32 %s87, 1
        %s1074 = scalar_lea.sflag [#allocation6], %s1073
        %s1075 = sand.u32 %s87, 1
        %s1076 = smul.addr %s1075, 128
        %s1077 = scalar_lea.vmem [#allocation9], %s1076
        %s1078 = sand.u32 %s113, 1
        %s1079 = scalar_lea.sflag [#allocation11], %s1078
        %s1080 = sand.u32 %s113, 1
        %s1081 = smul.addr %s1080, 128
        %s1082 = scalar_lea.vmem [#allocation10], %s1081
        // Predicated region
        $region61: #{tpu_custom_call.1} parent=27 // pred_check
          %p1083 = pneg %p97
        $region62: #{tpu_custom_call.1} parent=27 // pred_check_branch
          %1085 = sbr.rel (%p1083) target = $region64
        $region63: #{tpu_custom_call.1} parent=27 // pred_region
          %s1086 = smul.u32 16, %s28
          %s1088 = ssub.s32 2048, 2048
          %1089 = vsyncadd %s1074, %s1088
          %s1090 = smul.addr %s27, 32
          %s1091 = sadd.s32 %s1086, %s1090
          %s1092 = smul.addr %s1091, 128
          %s1093 = scalar_lea.hbm %s2, %s1092
          %s1094 = sshll.u32 %s1077, 4
          %s1095 = int_to_ptr.vmem [resolvable:$true] %s1094
          %1100 = dma.vmem_to_hbm [thread:$0]  %s1095, 2048, %s1093, %s1074, 128, 128, 8
        $region64: #{tpu_custom_call.1} parent=27 // pred_fallthru
          _
        // Predicated region
        $region65: #{tpu_custom_call.1} parent=27 // pred_check
          %p1101 = pneg %p123
        $region66: #{tpu_custom_call.1} parent=27 // pred_check_branch
          %1103 = sbr.rel (%p1101) target = $region68
        $region67: #{tpu_custom_call.1} parent=27 // pred_region
          %s1104 = smul.u32 16, %s28
          %s1106 = ssub.s32 2048, 2048
          %1107 = vsyncadd %s1079, %s1106
          %s1108 = smul.addr %s1104, 128
          %s1109 = scalar_lea.hbm %s3, %s1108
          %s1110 = sshll.u32 %s1082, 4
          %s1111 = int_to_ptr.vmem [resolvable:$true] %s1110
          %1116 = dma.vmem_to_hbm [thread:$0]  %s1111, 2048, %s1109, %s1079, 128, 128, 8
        $region68: #{tpu_custom_call.1} parent=27 // pred_fallthru
          _
      $region28: #{tpu_custom_call.1} parent=5 // pred_fallthru
        _
      %p1117 = scmp.le.s32.totalorder 2, %s18
      // Predicated region
      $region69: #{tpu_custom_call.1} parent=5 // pred_check
        %p1118 = pneg %p1117
      $region70: #{tpu_custom_call.1} parent=5 // pred_check_branch
        %1120 = sbr.rel (%p1118) target = $region72
      $region71: #{tpu_custom_call.1} parent=5 // pred_region
        %s1121 = ssub.s32 %s18, 2
        // Predicated region
        $region73: #{tpu_custom_call.1} parent=71 // pred_check
          %p1122 = pneg %p103
        $region74: #{tpu_custom_call.1} parent=71 // pred_check_branch
          %1124 = sbr.rel (%p1122) target = $region76
        $region75: #{tpu_custom_call.1} parent=71 // pred_region
          %s1125 = sand.u32 %s88, 1
          %s1126 = scalar_lea.sflag [#allocation6], %s1125
          %s1127 = sand.u32 %s88, 1
          %s1128 = smul.addr %s1127, 128
          %s1129 = scalar_lea.vmem [#allocation9], %s1128
          %1130 = dma.done %s1126, 2048
        $region76: #{tpu_custom_call.1} parent=71 // pred_fallthru
          _
        // Predicated region
        $region77: #{tpu_custom_call.1} parent=71 // pred_check
          %p1131 = pneg %p129
        $region78: #{tpu_custom_call.1} parent=71 // pred_check_branch
          %1133 = sbr.rel (%p1131) target = $region80
        $region79: #{tpu_custom_call.1} parent=71 // pred_region
          %s1134 = sand.u32 %s114, 1
          %s1135 = scalar_lea.sflag [#allocation11], %s1134
          %s1136 = sand.u32 %s114, 1
          %s1137 = smul.addr %s1136, 128
          %s1138 = scalar_lea.vmem [#allocation10], %s1137
          %1139 = dma.done %s1135, 2048
        $region80: #{tpu_custom_call.1} parent=71 // pred_fallthru
          _
      $region72: #{tpu_custom_call.1} parent=5 // pred_fallthru
        _
    $region6: #{tpu_custom_call.1} parent=1 // loop_footer
      %s22 = sadd.s32 1, %s18
    $region7: #{tpu_custom_call.1} parent=1 // loop_footer_branch
      %17 = sbr.rel target = $region3
    $region8: #{tpu_custom_call.1} parent=1 // loop_exit
      _
    %1140 = vsyncpa [#allocation5], 1
    %s1141 = scalar_lea.sflag [#allocation5], 1
    %1142 = vsyncpa %s1141, 1
    %1143 = vsyncpa [#allocation8], 1
    %1144 = vsyncpa [#allocation6], 1
    %s1145 = scalar_lea.sflag [#allocation6], 1
    %1146 = vsyncpa %s1145, 1
    %1147 = vsyncpa [#allocation11], 1
    %s1148 = scalar_lea.sflag [#allocation11], 1
    %1149 = vsyncpa %s1148, 1

</llo_original>
